<compile_context>
chip_gen: v7x
topology: tpu7x:2x2x1
jax: 0.10.0
libtpu: 0.0.40
codegen_flags: <defaults>
</compile_context>

<pallas_src>
from functools import partial

import jax
import jax.numpy as jnp
from jax import lax
from jax.experimental import pallas as pl
from jax.experimental.pallas import tpu as pltpu


def _round_up(n: int, m: int) -> int:
    return ((n + m - 1) // m) * m


def _default_bf16_epilogue() -> bool:
    """bf16 tanh on v6e/v7x (bf16 EUP), f32 on older generations (v5e and before)."""
    try:
        kind = jax.devices()[0].device_kind.lower()
    except Exception:
        return True
    for old in ("v2", "v3", "v4", "v5"):
        if old in kind:
            return False
    return True


# ----------------------------- kernel ---------------------------------------


def _reward_mlp_kernel(x_ref, w1_ref, b1_ref, w2_ref, b2_ref, o_ref, *, bf16_epilogue):
    """One batch tile.

    x_ref:  (TB, In)  f32   (cast to bf16 in-kernel, hidden under the DMA)
    w1_ref: (In, H)   bf16  (pinned)
    b1_ref: (1, H)    f32   (pinned)
    w2_ref: (Out, H)  bf16/f32 (pinned; layer-2 weight in (out, in) layout)
    b2_ref: (Out, 1)  f32   (pinned)
    o_ref:  (Out, TB) f32   (batch on the lane axis -> unmasked stores)
    """
    xb = x_ref[...].astype(jnp.bfloat16)                          # VPU cast under DMA
    h = jnp.dot(xb, w1_ref[...], preferred_element_type=jnp.float32)   # (TB, H) f32
    h = h + b1_ref[...]                                            # f32 bias add
    if bf16_epilogue:
        h = jnp.tanh(h.astype(jnp.bfloat16))                       # bf16 EUP (v6e/v7x)
    else:
        h = jnp.tanh(h)                                            # f32 EUP (v5e)
    # Lane-dense second layer: contract H of (Out, H) with H of (TB, H)
    # -> (Out, TB); batch lands on the 128-lane axis so stores are unmasked.
    y = lax.dot_general(
        w2_ref[...], h,
        dimension_numbers=(((1,), (1,)), ((), ())),
        preferred_element_type=jnp.float32)                        # (Out, TB) f32
    o_ref[...] = jax.nn.sigmoid(y + b2_ref[...]).astype(o_ref.dtype)


# ----------------------------- wrapper ---------------------------------------


def reward_model_network(x, w1_t, b1, w2_t, b2, *, block_batch=8192, bf16_epilogue=None):
    """Forward pass of RewardModelNetwork.

    x:    (B, In)  float32
    w1_t: (In, H)  float32   (layer-1 weight stored transposed, (in, out))
    b1:   (1, H)   float32
    w2_t: (H, Out) float32   (layer-2 weight stored transposed)
    b2:   (1, Out) float32
    returns (B, Out) float32

    block_batch: batch rows per grid step.  8192 amortizes the ~0.35 us
    per-step overhead while staying inside the v7x 32 MiB scoped-VMEM default
    (tiles here are lane-padded to 128 on the feature axis).
    """
    B, In = x.shape
    H = w1_t.shape[1]
    Out = w2_t.shape[1]

    if bf16_epilogue is None:
        bf16_epilogue = _default_bf16_epilogue()

    # Tile selection: one full tile for small batches, otherwise a 128-lane
    # multiple; no padding of x — pl.cdiv grid + masked edge-block stores.
    if B <= block_batch:
        tb = B
    else:
        tb = _round_up(min(block_batch, B), 128)
    grid = (pl.cdiv(B, tb),)

    # Weights/biases are tiny: prep once in the wrapper.
    w1_bf16 = w1_t.astype(jnp.bfloat16)                             # (In, H)
    b1_f32 = b1.reshape(1, H).astype(jnp.float32)                   # (1, H)
    w2_dtype = jnp.bfloat16 if bf16_epilogue else jnp.float32
    w2_oh = jnp.transpose(w2_t).astype(w2_dtype)                    # (Out, H)
    b2_col = b2.reshape(Out, 1).astype(jnp.float32)                 # (Out, 1)

    pinned = lambda shape: pl.BlockSpec(shape, lambda i: (0,) * len(shape))

    out_t = pl.pallas_call(
        partial(_reward_mlp_kernel, bf16_epilogue=bf16_epilogue),
        out_shape=jax.ShapeDtypeStruct((Out, B), jnp.float32),
        grid=grid,
        in_specs=[
            pl.BlockSpec((tb, In), lambda i: (i, 0)),               # x tile (f32)
            pinned((In, H)),                                        # W1
            pinned((1, H)),                                         # b1
            pinned((Out, H)),                                       # W2 (out, in)
            pinned((Out, 1)),                                       # b2
        ],
        out_specs=pl.BlockSpec((Out, tb), lambda i: (0, i)),        # lane-dense
        compiler_params=pltpu.CompilerParams(
            dimension_semantics=("parallel",)),
    )(x, w1_bf16, b1_f32, w2_oh, b2_col)

    # (Out, B) -> (B, Out); Out is tiny so this transpose is negligible
    # (and a free bitcast for the common Out == 1 reward head).
    return jnp.transpose(out_t)


# --------------------------- init / reference --------------------------------


def init_params(key, input_size, hidden_size, output_size):
    """Deterministic init mirroring nn.Linear default (uniform +-1/sqrt(fan_in))."""
    k1, k2, k3, k4 = jax.random.split(key, 4)
    bound1 = 1.0 / jnp.sqrt(jnp.float32(input_size))
    bound2 = 1.0 / jnp.sqrt(jnp.float32(hidden_size))
    # Stored already transposed: (in, out) layout.
    w1_t = jax.random.uniform(k1, (input_size, hidden_size), jnp.float32, -bound1, bound1)
    b1 = jax.random.uniform(k2, (1, hidden_size), jnp.float32, -bound1, bound1)
    w2_t = jax.random.uniform(k3, (hidden_size, output_size), jnp.float32, -bound2, bound2)
    b2 = jax.random.uniform(k4, (1, output_size), jnp.float32, -bound2, bound2)
    return w1_t, b1, w2_t, b2


def reference(x, w1_t, b1, w2_t, b2):
    h = jnp.tanh(x @ w1_t + b1)
    return jax.nn.sigmoid(h @ w2_t + b2)


if __name__ == "__main__":
    input_size, hidden_size, output_size = 32, 32, 1
    batch = 8

    key = jax.random.PRNGKey(0)
    kx, kp = jax.random.split(key)
    x = jax.random.normal(kx, (batch, input_size), jnp.float32)
    w1_t, b1, w2_t, b2 = init_params(kp, input_size, hidden_size, output_size)

    # Small single-tile case (GAIL reward head, output_size == 1).
    out = jax.block_until_ready(reward_model_network(x, w1_t, b1, w2_t, b2))
    ref = reference(x, w1_t, b1, w2_t, b2)
    assert out.shape == (batch, output_size)
    assert jnp.allclose(out, ref, atol=2e-2, rtol=2e-2), "mismatch vs reference (out1)"

    # Multi-tile case exercising the batch grid with a partial edge block
    # (B not a multiple of the tile; no padding pass over x).
    batch2 = 300
    x2 = jax.random.normal(kx, (batch2, input_size), jnp.float32)
    out2 = jax.block_until_ready(
        reward_model_network(x2, w1_t, b1, w2_t, b2, block_batch=128))
    ref2 = reference(x2, w1_t, b1, w2_t, b2)
    assert out2.shape == (batch2, output_size)
    assert jnp.allclose(out2, ref2, atol=2e-2, rtol=2e-2), "mismatch vs reference (tiled)"

    # Generic output_size > 1 path (still lane-dense internally).
    w1b, b1b, w2b, b2b = init_params(kp, input_size, hidden_size, 4)
    out3 = jax.block_until_ready(reward_model_network(x, w1b, b1b, w2b, b2b))
    ref3 = reference(x, w1b, b1b, w2b, b2b)
    assert out3.shape == (batch, 4)
    assert jnp.allclose(out3, ref3, atol=2e-2, rtol=2e-2), "mismatch vs reference (generic)"

    print("KERNEL_OK")
</pallas_src>

<mosaic_0001>
module attributes {stable_mosaic.version = 11 : i64} {
  func.func @_reward_mlp_kernel(%arg0: i32, %arg1: memref<8x32xf32, #tpu.memory_space<vmem>>, %arg2: memref<32x32xbf16, #tpu.memory_space<vmem>>, %arg3: memref<1x32xf32, #tpu.memory_space<vmem>>, %arg4: memref<1x32xbf16, #tpu.memory_space<vmem>>, %arg5: memref<1x1xf32, #tpu.memory_space<vmem>>, %arg6: memref<1x8xf32, #tpu.memory_space<vmem>>) attributes {dimension_semantics = [#tpu.dimension_semantics<parallel>], iteration_bounds = array<i64: 1>, scalar_prefetch = 0 : i64, scratch_operands = 0 : i64, tpu.core_type = #tpu.core_type<tc>, window_params = [{transform_indices = @transform_0, window_bounds = array<i64: 8, 32>}, {pipeline_mode = #tpu.pipeline_mode<synchronous>, transform_indices = @transform_1, window_bounds = array<i64: 32, 32>}, {pipeline_mode = #tpu.pipeline_mode<synchronous>, transform_indices = @transform_2, window_bounds = array<i64: 1, 32>}, {pipeline_mode = #tpu.pipeline_mode<synchronous>, transform_indices = @transform_3, window_bounds = array<i64: 1, 32>}, {pipeline_mode = #tpu.pipeline_mode<synchronous>, transform_indices = @transform_4, window_bounds = array<i64: 1, 1>}, {transform_indices = @transform_5, window_bounds = array<i64: 1, 8>}]} {
    %c0 = arith.constant 0 : index
    %c0_0 = arith.constant 0 : index
    %0 = vector.load %arg1[%c0, %c0_0] : memref<8x32xf32, #tpu.memory_space<vmem>>, vector<8x32xf32>
    %1 = arith.truncf %0 : vector<8x32xf32> to vector<8x32xbf16>
    %c0_1 = arith.constant 0 : index
    %c0_2 = arith.constant 0 : index
    %2 = vector.load %arg2[%c0_1, %c0_2] : memref<32x32xbf16, #tpu.memory_space<vmem>>, vector<32x32xbf16>
    %cst = arith.constant dense<0.000000e+00> : vector<8x32xf32>
    %3 = tpu.matmul %1, %2, %cst {dimension_numbers = #tpu.dot_dimension_numbers<[1], [0], [0], [1], [0, 0, 1, 1], [], []>} : vector<8x32xbf16>, vector<32x32xbf16>, vector<8x32xf32> -> vector<8x32xf32>
    %c0_3 = arith.constant 0 : index
    %c0_4 = arith.constant 0 : index
    %4 = vector.load %arg3[%c0_3, %c0_4] : memref<1x32xf32, #tpu.memory_space<vmem>>, vector<1x32xf32>
    %5 = vector.broadcast %4 : vector<1x32xf32> to vector<8x32xf32>
    %6 = arith.addf %3, %5 : vector<8x32xf32>
    %7 = arith.truncf %6 : vector<8x32xf32> to vector<8x32xbf16>
    %8 = math.tanh %7 : vector<8x32xbf16>
    %c0_5 = arith.constant 0 : index
    %c0_6 = arith.constant 0 : index
    %9 = vector.load %arg4[%c0_5, %c0_6] : memref<1x32xbf16, #tpu.memory_space<vmem>>, vector<1x32xbf16>
    %cst_7 = arith.constant dense<0.000000e+00> : vector<1x8xf32>
    %10 = tpu.matmul %9, %8, %cst_7 {dimension_numbers = #tpu.dot_dimension_numbers<[1], [1], [0], [0], [0, 0, 1, 0], [], []>} : vector<1x32xbf16>, vector<8x32xbf16>, vector<1x8xf32> -> vector<1x8xf32>
    %c0_8 = arith.constant 0 : index
    %c0_9 = arith.constant 0 : index
    %11 = vector.load %arg5[%c0_8, %c0_9] : memref<1x1xf32, #tpu.memory_space<vmem>>, vector<1x1xf32>
    %12 = vector.broadcast %11 : vector<1x1xf32> to vector<1x8xf32>
    %13 = arith.addf %10, %12 : vector<1x8xf32>
    %14 = arith.negf %13 : vector<1x8xf32>
    %15 = math.exp %14 : vector<1x8xf32>
    %cst_10 = arith.constant 1.000000e+00 : f32
    %16 = vector.broadcast %cst_10 : f32 to vector<1x8xf32>
    %17 = arith.addf %16, %15 : vector<1x8xf32>
    %18 = arith.divf %16, %17 : vector<1x8xf32>
    %c0_11 = arith.constant 0 : index
    %c0_12 = arith.constant 0 : index
    %19 = vector.load %arg6[%c0_11, %c0_12] : memref<1x8xf32, #tpu.memory_space<vmem>>, vector<1x8xf32>
    tpu.vector_store %arg6[%c0_11, %c0_12], %18 {strides = array<i32>} : memref<1x8xf32, #tpu.memory_space<vmem>>, vector<1x8xf32>,
    return
  }
  func.func @transform_0(%arg0: i32) -> (i32, i32) {
    %c0_i32 = arith.constant 0 : i32
    %c0_i32_0 = arith.constant 0 : i32
    return %arg0, %c0_i32 : i32, i32
  }
  func.func @transform_1(%arg0: i32) -> (i32, i32) {
    %c0_i32 = arith.constant 0 : i32
    %c0_i32_0 = arith.constant 0 : i32
    %c0_i32_1 = arith.constant 0 : i32
    return %c0_i32, %c0_i32_0 : i32, i32
  }
  func.func @transform_2(%arg0: i32) -> (i32, i32) {
    %c0_i32 = arith.constant 0 : i32
    %c0_i32_0 = arith.constant 0 : i32
    %c0_i32_1 = arith.constant 0 : i32
    return %c0_i32, %c0_i32_0 : i32, i32
  }
  func.func @transform_3(%arg0: i32) -> (i32, i32) {
    %c0_i32 = arith.constant 0 : i32
    %c0_i32_0 = arith.constant 0 : i32
    %c0_i32_1 = arith.constant 0 : i32
    return %c0_i32, %c0_i32_0 : i32, i32
  }
  func.func @transform_4(%arg0: i32) -> (i32, i32) {
    %c0_i32 = arith.constant 0 : i32
    %c0_i32_0 = arith.constant 0 : i32
    %c0_i32_1 = arith.constant 0 : i32
    return %c0_i32, %c0_i32_0 : i32, i32
  }
  func.func @transform_5(%arg0: i32) -> (i32, i32) {
    %c0_i32 = arith.constant 0 : i32
    %c0_i32_0 = arith.constant 0 : i32
    return %c0_i32, %arg0 : i32, i32
  }
}

</mosaic_0001>

<llo_original>
// kernel: tpu_custom_call.1
$region0: #{tpu_custom_call.1}
  #allocation0 [shape = 'u32[]', space=smem, size = 0x4, offset = 0x4, fixed_abs, tag = 'smem constant byte address 0x4 - core index']
  #allocation1 [shape = 'u32[144,128]{1,0:T(1,128)}', space=vmem, size = 0x12000, scoped, tag = 'internal scratch']
  #allocation2 [shape = 'f32[1,1]{1,0:T(1,128)S(1)}', space=vmem, size = 0x200, scoped, tag = 'scoped memory for tpu_custom_call.1']
  %s0 = inlined_call_operand.hbm [shape: f32[8,32], index: 0, kind: input, shape index: {}]
  %s1 = inlined_call_operand.hbm [shape: bf16[32,32], index: 1, kind: input, shape index: {}]
  %s2 = inlined_call_operand.vmem [shape: f32[1,32], index: 2, kind: input, shape index: {}]
  %s3 = inlined_call_operand.vmem [shape: bf16[1,32], index: 3, kind: input, shape index: {}]
  %s4 = inlined_call_operand.<no memory space> [shape: f32[1,1], index: 4, kind: input, shape index: {}]
  %s5 = inlined_call_operand.hbm [shape: f32[1,8], index: 5, kind: output, shape index: {}]
  %s6 = sld [smem:[#allocation0]]
  $region38: #{tpu_custom_call.1} parent=0
    _
  %s8 = ssub.s32 1, %s6
  %s9 = scalar_select 0, %s8, %s6
  %v10 = vstv %s4
  %11 = vst [vmem:[#allocation2] sm:$0x1] %v10
  $region1: #{tpu_custom_call.1} parent=0
    #allocation3 [shape = 'u8[4096]{0}', space=vmem, size = 0x1000, scoped, tag = 'input window, operand 0, single buffered']
    #allocation4 [shape = 's32[1]{0}', space=sflag, size = 0x4, scoped, tag = 'scoped memory for tpu_custom_call.1']
    #allocation5 [shape = 's32[1]{0}', space=sflag, size = 0x4, scoped, tag = 'scoped memory for tpu_custom_call.1']
    #allocation6 [shape = 'u8[8192]{0}', space=vmem, size = 0x2000, scoped, tag = 'input window, operand 1, single buffered']
    #allocation7 [shape = 's32[1]{0}', space=sflag, size = 0x4, scoped, tag = 'scoped memory for tpu_custom_call.1']
    #allocation8 [shape = 'u8[512]{0}', space=vmem, size = 0x400, scoped, tag = 'output window, operand 0, single buffered']
    %12 = vsyncpa [#allocation4], 0
    %13 = vsyncpa [#allocation7], 0
    %14 = vsyncpa [#allocation5], 0
    // Predicated region
    $region2: #{tpu_custom_call.1} parent=1 // pred_check
      _
    $region3: #{tpu_custom_call.1} parent=1 // pred_check_branch
      %16 = sbr.rel (0) target = $region5
    $region4: #{tpu_custom_call.1} parent=1 // pred_region
      %s18 = ssub.s32 128, 128
      %19 = vsyncadd [#allocation4], %s18
      %s21 = sshll.u32 [#allocation3], 4
      %s22 = int_to_ptr.vmem [resolvable:$true] %s21
      %24 = dma.hbm_to_vmem [thread:$0]  %s0, 128, %s22, [#allocation4]
    $region5: #{tpu_custom_call.1} parent=1 // pred_fallthru
      _
    // Predicated region
    $region6: #{tpu_custom_call.1} parent=1 // pred_check
      _
    $region7: #{tpu_custom_call.1} parent=1 // pred_check_branch
      %26 = sbr.rel (0) target = $region9
    $region8: #{tpu_custom_call.1} parent=1 // pred_region
      %s28 = ssub.s32 256, 256
      %29 = vsyncadd [#allocation7], %s28
      %s30 = sshll.u32 [#allocation6], 4
      %s31 = int_to_ptr.vmem [resolvable:$true] %s30
      %36 = dma.hbm_to_vmem [thread:$0]  %s1, 256, %s31, [#allocation7], 64, 64, 4
    $region9: #{tpu_custom_call.1} parent=1 // pred_fallthru
      _
    // Predicated region
    $region10: #{tpu_custom_call.1} parent=1 // pred_check
      _
    $region11: #{tpu_custom_call.1} parent=1 // pred_check_branch
      %38 = sbr.rel (0) target = $region13
    $region12: #{tpu_custom_call.1} parent=1 // pred_region
      _
    $region13: #{tpu_custom_call.1} parent=1 // pred_fallthru
      _
    // Predicated region
    $region14: #{tpu_custom_call.1} parent=1 // pred_check
      _
    $region15: #{tpu_custom_call.1} parent=1 // pred_check_branch
      %40 = sbr.rel (0) target = $region17
    $region16: #{tpu_custom_call.1} parent=1 // pred_region
      _
    $region17: #{tpu_custom_call.1} parent=1 // pred_fallthru
      _
    // Predicated region
    $region18: #{tpu_custom_call.1} parent=1 // pred_check
      _
    $region19: #{tpu_custom_call.1} parent=1 // pred_check_branch
      %42 = sbr.rel (0) target = $region21
    $region20: #{tpu_custom_call.1} parent=1 // pred_region
      _
    $region21: #{tpu_custom_call.1} parent=1 // pred_fallthru
      _
    // Predicated region
    $region22: #{tpu_custom_call.1} parent=1 // pred_check
      _
    $region23: #{tpu_custom_call.1} parent=1 // pred_check_branch
      %44 = sbr.rel (0) target = $region25
    $region24: #{tpu_custom_call.1} parent=1 // pred_region
      %45 = dma.done [#allocation4], 128
    $region25: #{tpu_custom_call.1} parent=1 // pred_fallthru
      _
    // Predicated region
    $region26: #{tpu_custom_call.1} parent=1 // pred_check
      _
    $region27: #{tpu_custom_call.1} parent=1 // pred_check_branch
      %47 = sbr.rel (0) target = $region29
    $region28: #{tpu_custom_call.1} parent=1 // pred_region
      %48 = dma.done [#allocation7], 256
    $region29: #{tpu_custom_call.1} parent=1 // pred_fallthru
      _
    %v50 = vld [vmem:[#allocation3] sm:$0xff]
    %v51 = vpack.c.bf16 %v50, %v50
    %v52 = vld [vmem:[#allocation6] sm:$0xf]
    %v53 = vld [vmem:[#allocation6 + $0x4] sm:$0xf]
    %v54 = vld [vmem:[#allocation6 + $0x8] sm:$0xf]
    %v55 = vld [vmem:[#allocation6 + $0xc] sm:$0xf]
    %v56 = vld [vmem:[%s2] sm:$0x1]
    %v58 = vlaneseq
    %v59 = vshrl.u32 %v58, 7
    %v60 = vsub.s32 0, %v59
    %v61 = vrot.slane %v56, %v60
    %v67 = vunpack.c.l.b16 %v52
    %v68 = vunpack.c.l.b16 %v53
    %v69 = vunpack.c.l.b16 %v54
    %v70 = vunpack.c.l.b16 %v55
    %v71 = vpack.c.b16 %v68, %v67
    %v72 = vpack.c.b16 %v70, %v69
    %vm75 = vcmask 261120
    %v77 = vsel %vm75, %v51, 0
    %79 = vmatprep.subr.bf16.mxu0 0
    %80 = vmatpush1.bf16.msra.mxu0 %v71
    %81 = vmatprep.subr.bf16.mxu0 0
    %82 = vmatpush1.bf16.msra.mxu0 %v72
    %83 = vmatprep.subr.bf16.mxu0 0
    %84 = vmatpush1.bf16.msra.mxu0 0
    %85 = vmatprep.subr.bf16.mxu0 0
    %86 = vmatpush1.bf16.msra.mxu0 0
    %87 = vmatprep.subr.bf16.mxu0 0
    %88 = vmatpush1.bf16.msra.mxu0 0
    %89 = vmatprep.subr.bf16.mxu0 0
    %90 = vmatpush1.bf16.msra.mxu0 0
    %91 = vmatprep.subr.bf16.mxu0 0
    %92 = vmatpush1.bf16.msra.mxu0 0
    %93 = vmatprep.subr.bf16.mxu0 0
    %94 = vmatpush1.bf16.msra.mxu0 0
    %95 = vmatprep.subr.bf16.mxu0 0
    %96 = vmatpush1.bf16.msra.mxu0 0
    %97 = vmatprep.subr.bf16.mxu0 0
    %98 = vmatpush1.bf16.msra.mxu0 0
    %99 = vmatprep.subr.bf16.mxu0 0
    %100 = vmatpush1.bf16.msra.mxu0 0
    %101 = vmatprep.subr.bf16.mxu0 0
    %102 = vmatpush1.bf16.msra.mxu0 0
    %103 = vmatprep.subr.bf16.mxu0 0
    %104 = vmatpush1.bf16.msra.mxu0 0
    %105 = vmatprep.subr.bf16.mxu0 0
    %106 = vmatpush1.bf16.msra.mxu0 0
    %107 = vmatprep.subr.bf16.mxu0 0
    %108 = vmatpush1.bf16.msra.mxu0 0
    %109 = vmatprep.subr.bf16.mxu0 0
    %110 = vmatpush1.bf16.msra.mxu0 0
    %111 = vmatprep.mubr.bf16.mxu0 0
    %112 = vmatmul.mubr.bf16.gmra.mrb[0].mxu0 %v77
    %v113 = vpop.f32.mrb[0].mxu0
    %v114 = vadd.f32 %v61, %v113
    %v115 = vpop.f32.mrb[0].mxu0
    %v116 = vpop.f32.mrb[0].mxu0
    %v117 = vpop.f32.mrb[0].mxu0
    %118 = vdwg.mxu0
    %v119 = vpack.c.bf16 %v114, %v114
    %v120 = vtanh.bf16.pop %v119
    %v121 = vld [vmem:[%s3] sm:$0x1]
    %v122 = vld [vmem:[#allocation2] sm:$0x1]
    %124 = vset.pattern.permute.xlu0 0
    %125 = vperm.xlu0 %124, %v122
    %v126 = vpop.permute.xlu0 %125
    %v128 = vlaneseq
    %v129 = vshrl.u32 %v128, 7
    %v130 = vsub.s32 0, %v129
    %v131 = vrot.slane %v126, %v130
    %v133 = vsel %vm75, %v121, 0
    %v136 = vsel %vm75, %v120, 0
    %138 = vmatprep.subr.bf16.mxu0 0
    %139 = vmatpush1.bf16.xpose.msra.mxu0 %v136
    %140 = vmatprep.subr.bf16.mxu0 0
    %141 = vmatpush1.bf16.xpose.msra.mxu0 0
    %142 = vmatprep.subr.bf16.mxu0 0
    %143 = vmatpush1.bf16.xpose.msra.mxu0 0
    %144 = vmatprep.subr.bf16.mxu0 0
    %145 = vmatpush1.bf16.xpose.msra.mxu0 0
    %146 = vmatprep.subr.bf16.mxu0 0
    %147 = vmatpush1.bf16.xpose.msra.mxu0 0
    %148 = vmatprep.subr.bf16.mxu0 0
    %149 = vmatpush1.bf16.xpose.msra.mxu0 0
    %150 = vmatprep.subr.bf16.mxu0 0
    %151 = vmatpush1.bf16.xpose.msra.mxu0 0
    %152 = vmatprep.subr.bf16.mxu0 0
    %153 = vmatpush1.bf16.xpose.msra.mxu0 0
    %154 = vmatprep.subr.bf16.mxu0 0
    %155 = vmatpush1.bf16.xpose.msra.mxu0 0
    %156 = vmatprep.subr.bf16.mxu0 0
    %157 = vmatpush1.bf16.xpose.msra.mxu0 0
    %158 = vmatprep.subr.bf16.mxu0 0
    %159 = vmatpush1.bf16.xpose.msra.mxu0 0
    %160 = vmatprep.subr.bf16.mxu0 0
    %161 = vmatpush1.bf16.xpose.msra.mxu0 0
    %162 = vmatprep.subr.bf16.mxu0 0
    %163 = vmatpush1.bf16.xpose.msra.mxu0 0
    %164 = vmatprep.subr.bf16.mxu0 0
    %165 = vmatpush1.bf16.xpose.msra.mxu0 0
    %166 = vmatprep.subr.bf16.mxu0 0
    %167 = vmatpush1.bf16.xpose.msra.mxu0 0
    %168 = vmatprep.subr.bf16.mxu0 0
    %169 = vmatpush1.bf16.xpose.msra.mxu0 0
    %170 = vmatprep.mubr.bf16.mxu0 0
    %171 = vmatmul.mubr.bf16.gmra.mrb[0].mxu0 %v133
    %v172 = vpop.f32.mrb[0].mxu0
    %v173 = vadd.f32 %v131, %v172
    %v174 = vpop.f32.mrb[0].mxu0
    %v175 = vpop.f32.mrb[0].mxu0
    %v176 = vpop.f32.mrb[0].mxu0
    %177 = vdwg.mxu0
    %v178 = vxor.u32 %v173, 2147483648
    %v179 = vmul.f32 %v178, 1.442695
    %v180 = vpow.pop %v179
    %v181 = vadd.f32 %v180, 1.0
    %v182 = vrcp.pop %v181
    %v183 = vmul.f32 1.0, %v182
    %vm184 = vcmask 57344
    %185 = vst.msk [vmem:[#allocation8] sm:$0x1] %vm184, %v183
    // Predicated region
    $region30: #{tpu_custom_call.1} parent=1 // pred_check
      _
    $region31: #{tpu_custom_call.1} parent=1 // pred_check_branch
      %187 = sbr.rel (0) target = $region33
    $region32: #{tpu_custom_call.1} parent=1 // pred_region
      %s189 = ssub.s32 16, 16
      %190 = vsyncadd [#allocation5], %s189
      %s192 = sshll.u32 [#allocation8], 4
      %s193 = int_to_ptr.vmem [resolvable:$true] %s192
      %195 = dma.vmem_to_hbm [thread:$0]  %s193, 16, %s5, [#allocation5]
    $region33: #{tpu_custom_call.1} parent=1 // pred_fallthru
      _
    // Predicated region
    $region34: #{tpu_custom_call.1} parent=1 // pred_check
      _
    $region35: #{tpu_custom_call.1} parent=1 // pred_check_branch
      %197 = sbr.rel (0) target = $region37
    $region36: #{tpu_custom_call.1} parent=1 // pred_region
      %198 = dma.done [#allocation5], 16
    $region37: #{tpu_custom_call.1} parent=1 // pred_fallthru
      _
    %199 = vsyncpa [#allocation4], 1
    %200 = vsyncpa [#allocation7], 1
    %201 = vsyncpa [#allocation5], 1

</llo_original>
